<compile_context>
chip_gen: v6e
topology: v6e:2x2x1
jax: 0.10.0
libtpu: 0.0.40
codegen_flags: <defaults>
</compile_context>

<pallas_src>
import functools

import jax
import jax.numpy as jnp
from jax.experimental import pallas as pl
from jax.experimental.pallas import tpu as pltpu


# ----------------------------------------------------------------------------- kernel


def _qkv_lora_kernel(x_ref, w_ref, b_ref, a_ref, bdiag_ref, main_ref, tasks_ref,
                     *, r3, n_tasks):
    """One grid step == one row tile; computes all of q|k|v and all tasks.

      pretrained = x @ W_all + bias                           (tile_m, 3*Cout)
      xa         = x @ A_all                                  (tile_m, (T+1)*3*r)
      main       = pretrained + xa[:, slot 0]   @ Bdiag[0]    (shared LoRA, scale folded)
      task[t]    = pretrained + xa[:, slot t+1] @ Bdiag[t+1]  (per-task LoRA, scale folded)
    """
    x = x_ref[...]                                                       # (tile_m, Cin)

    # Dense pretrained path (dominant FLOPs): one fused q|k|v matmul.
    pretrained = jnp.dot(x, w_ref[...], preferred_element_type=jnp.float32)
    pretrained = pretrained + b_ref[...].astype(jnp.float32)             # (tile_m, 3*Cout)

    # Fused first-stage LoRA matmul: shared + all tasks, all branches, one Cin contraction.
    xa = jnp.dot(x, a_ref[...], preferred_element_type=jnp.float32)      # (tile_m, (T+1)*3r)

    # Shared LoRA -> main output (already in q|k|v concatenated column layout thanks to
    # the block-diagonal second-stage operand).
    lora_sh = jnp.dot(xa[:, 0:r3], bdiag_ref[0],
                      preferred_element_type=jnp.float32)
    main_ref[...] = (pretrained + lora_sh).astype(main_ref.dtype)

    # Per-task LoRA branches (static, small T).
    for t in range(n_tasks):
        lo = (t + 1) * r3
        lora_t = jnp.dot(xa[:, lo:lo + r3], bdiag_ref[t + 1],
                         preferred_element_type=jnp.float32)
        tasks_ref[t] = (pretrained + lora_t).astype(tasks_ref.dtype)


# ----------------------------------------------------------------------------- helpers


def _round_up(x, m):
    return ((x + m - 1) // m) * m


def _tpu_vmem_bytes():
    """Physical VMEM capacity; conservative (v7x-sized) fallback if the query fails."""
    try:
        return int(pltpu.get_tpu_info().vmem_capacity_bytes)
    except Exception:
        return 64 * 1024 * 1024


def _row_align(dtype):
    """Sublane packing granularity: f32 -> 8 rows, bf16 -> 16, int8/fp8 -> 32."""
    return max(8, 32 // jnp.dtype(dtype).itemsize)


def _pick_tile_m(M, *, cap, row_align):
    """MXU-friendly row tile; M is padded up to it, so no divisor constraint."""
    if M <= cap:
        return _round_up(M, row_align)
    t = (cap // 256) * 256            # MXU row blocks are 256 on v6e/v7x (128 on v5e)
    return t if t >= 256 else max(128, row_align)


def _shrink_to_fit(tile_m, *, Cin, C3, R3, T, in_itemsize, out_itemsize, budget, row_align):
    """Halve tile_m until the per-step VMEM footprint fits under `budget`."""
    weights = 2 * (Cin * C3 + C3 + Cin * R3 + (T + 1) * R3 * C3) * in_itemsize  # dbl-buffered
    def need(tm):
        io = 2 * (tm * Cin * in_itemsize + (T + 1) * tm * C3 * out_itemsize)    # x + outputs
        f32_tmp = 2 * tm * (C3 + R3) * 4                                        # pretrained + xa
        return weights + io + f32_tmp
    while tile_m > row_align and need(tile_m) > budget:
        tile_m = max(row_align, _round_up(tile_m // 2, row_align))
    return tile_m


# ----------------------------------------------------------------------------- packing


def pack_params(W, b, A_sh, B_sh, A_t, B_t, *, shared_scale, task_scales):
    """Fuse the q/k/v branches and shared + per-task LoRA into MXU-friendly operands.

    Inputs (pre-transposed to "x @ W" form):
      W   : (3, Cin, Cout)   b   : (3, 1, Cout)
      A_sh: (3, Cin, r)      B_sh: (3, r, Cout)
      A_t : (3, T, Cin, r)   B_t : (3, T, r, Cout)
    Returns:
      W      (Cin, 3*Cout), b (1, 3*Cout),
      A_all  (Cin, (T+1)*3*r)     slot-major: [shared | task0 | ... ], each slot = q,k,v cols
      B_diag (T+1, 3*r, 3*Cout)   per-slot block-diagonal second stage, LoRA scale folded in.
    """
    n_br, Cin, Cout = W.shape
    assert n_br == 3
    T = A_t.shape[1]
    r = A_sh.shape[-1]
    dtype = W.dtype

    W_all = jnp.concatenate([W[br] for br in range(3)], axis=-1)           # (Cin, 3*Cout)
    b_all = jnp.concatenate([b[br] for br in range(3)], axis=-1)           # (1, 3*Cout)

    a_cols = [A_sh[br] for br in range(3)]
    for t in range(T):
        a_cols += [A_t[br, t] for br in range(3)]
    A_all = jnp.concatenate(a_cols, axis=-1)                               # (Cin, (T+1)*3*r)

    def blockdiag(mats, scale):
        out = jnp.zeros((3 * r, 3 * Cout), dtype)
        for br in range(3):
            out = out.at[br * r:(br + 1) * r, br * Cout:(br + 1) * Cout].set(
                mats[br].astype(dtype) * scale)
        return out

    slots = [blockdiag([B_sh[br] for br in range(3)], shared_scale)]
    for t in range(T):
        slots.append(blockdiag([B_t[br, t] for br in range(3)], task_scales[t]))
    B_diag = jnp.stack(slots, axis=0)                                      # (T+1, 3*r, 3*Cout)

    return {"W": W_all, "b": b_all, "A_all": A_all, "B_diag": B_diag}


# ----------------------------------------------------------------------------- wrapper


def mtlora_qkv_forward(x, params, *, tile_m=None, out_dtype=None):
    """x: (B, N, Cin). Returns (main (B,N,3*Cout), tasks (T,B,N,3*Cout))."""
    B, N, Cin = x.shape
    M = B * N
    W_all = params["W"]        # (Cin, 3*Cout)
    b_all = params["b"]        # (1, 3*Cout)
    A_all = params["A_all"]    # (Cin, (T+1)*3*r)
    B_diag = params["B_diag"]  # (T+1, 3*r, 3*Cout)
    C3 = W_all.shape[-1]
    R3 = B_diag.shape[1]
    T = B_diag.shape[0] - 1
    RA = A_all.shape[-1]
    out_dtype = x.dtype if out_dtype is None else out_dtype
    # NOTE: for fully lane-dense (unmasked) stores keep Cout a multiple of 128; smaller
    # Cout is still correct because the output block spans the full 3*Cout width.

    # Generation-aware VMEM budget / tile cap (v5e/v6e: 128 MiB -> 48 MiB / cap 1024,
    # v7x: 64 MiB -> 32 MiB / cap 512).
    vmem_cap = _tpu_vmem_bytes()
    vmem_limit = min(48 * 1024 * 1024, vmem_cap // 2)
    cap = 1024 if vmem_cap >= 100 * 1024 * 1024 else 512
    row_align = _row_align(x.dtype)

    if tile_m is None:
        tile_m = _pick_tile_m(M, cap=cap, row_align=row_align)
    tile_m = max(row_align, _round_up(tile_m, row_align))
    tile_m = _shrink_to_fit(
        tile_m, Cin=Cin, C3=C3, R3=R3, T=T,
        in_itemsize=jnp.dtype(x.dtype).itemsize,
        out_itemsize=jnp.dtype(out_dtype).itemsize,
        budget=int(vmem_limit * 0.75), row_align=row_align)

    M_pad = _round_up(M, tile_m)
    m_tiles = M_pad // tile_m

    x2d = x.reshape(M, Cin)
    if M_pad != M:
        x2d = jnp.pad(x2d, ((0, M_pad - M), (0, 0)))

    kernel = functools.partial(_qkv_lora_kernel, r3=R3, n_tasks=T)

    in_isz = jnp.dtype(x.dtype).itemsize
    w_isz = jnp.dtype(W_all.dtype).itemsize
    out_isz = jnp.dtype(out_dtype).itemsize
    flops = (2 * M_pad * Cin * C3                 # pretrained
             + 2 * M_pad * Cin * RA               # fused LoRA-A
             + 2 * M_pad * R3 * C3 * (T + 1))     # block-diag LoRA-B
    bytes_accessed = (x2d.size * in_isz
                      + (W_all.size + b_all.size + A_all.size + B_diag.size) * w_isz
                      + (T + 1) * M_pad * C3 * out_isz)

    main2d, tasks3d = pl.pallas_call(
        kernel,
        out_shape=(
            jax.ShapeDtypeStruct((M_pad, C3), out_dtype),
            jax.ShapeDtypeStruct((T, M_pad, C3), out_dtype),
        ),
        grid_spec=pltpu.PrefetchScalarGridSpec(
            num_scalar_prefetch=0,
            grid=(m_tiles,),                                           # rows only; weights resident
            in_specs=[
                pl.BlockSpec((tile_m, Cin), lambda m: (m, 0)),         # x row tile
                pl.BlockSpec((Cin, C3), lambda m: (0, 0)),             # fused W (constant idx)
                pl.BlockSpec((1, C3), lambda m: (0, 0)),               # fused bias
                pl.BlockSpec((Cin, RA), lambda m: (0, 0)),             # fused LoRA A
                pl.BlockSpec((T + 1, R3, C3), lambda m: (0, 0, 0)),    # block-diag LoRA B
            ],
            out_specs=[
                pl.BlockSpec((tile_m, C3), lambda m: (m, 0)),          # main (q|k|v concat)
                pl.BlockSpec((T, tile_m, C3), lambda m: (0, m, 0)),    # per-task outputs
            ],
        ),
        compiler_params=pltpu.CompilerParams(
            dimension_semantics=("parallel",),
            vmem_limit_bytes=int(vmem_limit),
        ),
        cost_estimate=pl.CostEstimate(
            flops=int(flops), transcendentals=0, bytes_accessed=int(bytes_accessed)),
    )(x2d, W_all, b_all, A_all, B_diag)

    main = main2d[:M].reshape(B, N, C3)
    tasks = tasks3d[:, :M].reshape(T, B, N, C3)
    return main, tasks


# ----------------------------------------------------------------------------- reference


def _reference(x, W, b, A_sh, B_sh, A_t, B_t, *, shared_scale, task_scales):
    """Pure-JAX reference mirroring the PyTorch forward (x_tasks=None)."""
    T = A_t.shape[1]
    outs_main, outs_tasks = [], []
    for br in range(3):
        pretrained = x @ W[br] + b[br, 0]
        lora = (x @ A_sh[br]) @ B_sh[br] * shared_scale
        outs_main.append(pretrained + lora)
        per_task = []
        for t in range(T):
            lt = (x @ A_t[br, t]) @ B_t[br, t] * task_scales[t]
            per_task.append(pretrained + lt)
        outs_tasks.append(per_task)
    main = jnp.concatenate(outs_main, axis=-1)
    tasks = jnp.stack(
        [jnp.concatenate([outs_tasks[br][t] for br in range(3)], axis=-1) for t in range(T)],
        axis=0,
    )
    return main, tasks


if __name__ == "__main__":
    # Small, module-consistent shapes. N=20 makes M=40 non-divisible by tile_m=16, so the
    # pad-to-tile / slice-back path is exercised along with multi-tile pipelining.
    B, N, Cin, Cout = 2, 20, 64, 128
    r = 4
    task_names = ["task0", "task1"]
    T = len(task_names)
    shared_scale = 1.0
    task_scales = (0.5, 1.5)   # lora_task_scale per task

    key = jax.random.PRNGKey(0)
    ks = jax.random.split(key, 7)
    dtype = jnp.float32  # bf16 for real shapes; f32 here for exact verification

    # Deterministic synthetic parameters (note: the real reset_parameters zeros lora_B;
    # non-zero values are used so the LoRA path is exercised numerically).
    W = 0.05 * jax.random.normal(ks[0], (3, Cin, Cout), dtype)
    b = 0.05 * jax.random.normal(ks[1], (3, 1, Cout), dtype)
    A_sh = 0.05 * jax.random.normal(ks[2], (3, Cin, r), dtype)
    B_sh = 0.05 * jax.random.normal(ks[3], (3, r, Cout), dtype)
    A_t = 0.05 * jax.random.normal(ks[4], (3, T, Cin, r), dtype)
    B_t = 0.05 * jax.random.normal(ks[5], (3, T, r, Cout), dtype)
    x = jax.random.normal(ks[6], (B, N, Cin), dtype)

    params = pack_params(W, b, A_sh, B_sh, A_t, B_t,
                         shared_scale=shared_scale, task_scales=task_scales)

    main, task_out = mtlora_qkv_forward(x, params, tile_m=16)
    jax.block_until_ready((main, task_out))

    # Correctness check against pure-JAX reference.
    ref_main, ref_tasks = _reference(
        x, W, b, A_sh, B_sh, A_t, B_t, shared_scale=shared_scale, task_scales=task_scales
    )
    assert main.shape == (B, N, 3 * Cout)
    assert task_out.shape == (T, B, N, 3 * Cout)
    assert jnp.allclose(main, ref_main, atol=1e-4, rtol=1e-4)
    assert jnp.allclose(task_out, ref_tasks, atol=1e-4, rtol=1e-4)

    task_dict = {t: task_out[i] for i, t in enumerate(task_names)}  # mirrors the torch dict output
    del task_dict

    print("KERNEL_OK")
</pallas_src>

<mosaic_0001>
module attributes {stable_mosaic.version = 11 : i64} {
  func.func @_qkv_lora_kernel(%arg0: i32, %arg1: memref<16x64xf32, #tpu.memory_space<vmem>>, %arg2: memref<64x384xf32, #tpu.memory_space<vmem>>, %arg3: memref<1x384xf32, #tpu.memory_space<vmem>>, %arg4: memref<64x36xf32, #tpu.memory_space<vmem>>, %arg5: memref<3x12x384xf32, #tpu.memory_space<vmem>>, %arg6: memref<16x384xf32, #tpu.memory_space<vmem>>, %arg7: memref<2x16x384xf32, #tpu.memory_space<vmem>>) attributes {dimension_semantics = [#tpu.dimension_semantics<parallel>], iteration_bounds = array<i64: 3>, scalar_prefetch = 0 : i64, scratch_operands = 0 : i64, tpu.core_type = #tpu.core_type<tc>, window_params = [{transform_indices = @transform_0, window_bounds = array<i64: 16, 64>}, {pipeline_mode = #tpu.pipeline_mode<synchronous>, transform_indices = @transform_1, window_bounds = array<i64: 64, 384>}, {pipeline_mode = #tpu.pipeline_mode<synchronous>, transform_indices = @transform_2, window_bounds = array<i64: 1, 384>}, {pipeline_mode = #tpu.pipeline_mode<synchronous>, transform_indices = @transform_3, window_bounds = array<i64: 64, 36>}, {pipeline_mode = #tpu.pipeline_mode<synchronous>, transform_indices = @transform_4, window_bounds = array<i64: 3, 12, 384>}, {transform_indices = @transform_5, window_bounds = array<i64: 16, 384>}, {transform_indices = @transform_6, window_bounds = array<i64: 2, 16, 384>}]} {
    %c0 = arith.constant 0 : index
    %c0_0 = arith.constant 0 : index
    %0 = vector.load %arg1[%c0, %c0_0] : memref<16x64xf32, #tpu.memory_space<vmem>>, vector<16x64xf32>
    %c0_1 = arith.constant 0 : index
    %c0_2 = arith.constant 0 : index
    %1 = vector.load %arg2[%c0_1, %c0_2] : memref<64x384xf32, #tpu.memory_space<vmem>>, vector<64x384xf32>
    %cst = arith.constant dense<0.000000e+00> : vector<16x384xf32>
    %2 = tpu.matmul %0, %1, %cst {dimension_numbers = #tpu.dot_dimension_numbers<[1], [0], [0], [1], [0, 0, 1, 1], [], []>} : vector<16x64xf32>, vector<64x384xf32>, vector<16x384xf32> -> vector<16x384xf32>
    %c0_3 = arith.constant 0 : index
    %c0_4 = arith.constant 0 : index
    %3 = vector.load %arg3[%c0_3, %c0_4] : memref<1x384xf32, #tpu.memory_space<vmem>>, vector<1x384xf32>
    %4 = vector.broadcast %3 : vector<1x384xf32> to vector<16x384xf32>
    %5 = arith.addf %2, %4 : vector<16x384xf32>
    %c0_5 = arith.constant 0 : index
    %c0_6 = arith.constant 0 : index
    %6 = vector.load %arg4[%c0_5, %c0_6] : memref<64x36xf32, #tpu.memory_space<vmem>>, vector<64x36xf32>
    %cst_7 = arith.constant dense<0.000000e+00> : vector<16x36xf32>
    %7 = tpu.matmul %0, %6, %cst_7 {dimension_numbers = #tpu.dot_dimension_numbers<[1], [0], [0], [1], [0, 0, 1, 1], [], []>} : vector<16x64xf32>, vector<64x36xf32>, vector<16x36xf32> -> vector<16x36xf32>
    %8 = vector.extract_strided_slice %7 {offsets = [0, 0], sizes = [16, 12], strides = [1, 1]} : vector<16x36xf32> to vector<16x12xf32>
    %c0_8 = arith.constant 0 : index
    %c0_9 = arith.constant 0 : index
    %c0_10 = arith.constant 0 : index
    %9 = vector.load %arg5[%c0_8, %c0_9, %c0_10] : memref<3x12x384xf32, #tpu.memory_space<vmem>>, vector<1x12x384xf32>
    %10 = vector.shape_cast %9 : vector<1x12x384xf32> to vector<12x384xf32>
    %cst_11 = arith.constant dense<0.000000e+00> : vector<16x384xf32>
    %11 = tpu.matmul %8, %10, %cst_11 {dimension_numbers = #tpu.dot_dimension_numbers<[1], [0], [0], [1], [0, 0, 1, 1], [], []>} : vector<16x12xf32>, vector<12x384xf32>, vector<16x384xf32> -> vector<16x384xf32>
    %12 = arith.addf %5, %11 : vector<16x384xf32>
    %c0_12 = arith.constant 0 : index
    %c0_13 = arith.constant 0 : index
    %13 = vector.load %arg6[%c0_12, %c0_13] : memref<16x384xf32, #tpu.memory_space<vmem>>, vector<16x384xf32>
    tpu.vector_store %arg6[%c0_12, %c0_13], %12 {strides = array<i32>} : memref<16x384xf32, #tpu.memory_space<vmem>>, vector<16x384xf32>,
    %14 = vector.extract_strided_slice %7 {offsets = [0, 12], sizes = [16, 12], strides = [1, 1]} : vector<16x36xf32> to vector<16x12xf32>
    %c1 = arith.constant 1 : index
    %c0_14 = arith.constant 0 : index
    %c0_15 = arith.constant 0 : index
    %15 = vector.load %arg5[%c1, %c0_14, %c0_15] : memref<3x12x384xf32, #tpu.memory_space<vmem>>, vector<1x12x384xf32>
    %16 = vector.shape_cast %15 : vector<1x12x384xf32> to vector<12x384xf32>
    %cst_16 = arith.constant dense<0.000000e+00> : vector<16x384xf32>
    %17 = tpu.matmul %14, %16, %cst_16 {dimension_numbers = #tpu.dot_dimension_numbers<[1], [0], [0], [1], [0, 0, 1, 1], [], []>} : vector<16x12xf32>, vector<12x384xf32>, vector<16x384xf32> -> vector<16x384xf32>
    %18 = arith.addf %5, %17 : vector<16x384xf32>
    %c0_17 = arith.constant 0 : index
    %c0_18 = arith.constant 0 : index
    %c0_19 = arith.constant 0 : index
    %19 = vector.load %arg7[%c0_17, %c0_18, %c0_19] : memref<2x16x384xf32, #tpu.memory_space<vmem>>, vector<1x16x384xf32>
    %20 = vector.shape_cast %19 : vector<1x16x384xf32> to vector<16x384xf32>
    %21 = vector.shape_cast %18 : vector<16x384xf32> to vector<1x16x384xf32>
    tpu.vector_store %arg7[%c0_17, %c0_18, %c0_19], %21 {strides = array<i32>} : memref<2x16x384xf32, #tpu.memory_space<vmem>>, vector<1x16x384xf32>,
    %22 = vector.extract_strided_slice %7 {offsets = [0, 24], sizes = [16, 12], strides = [1, 1]} : vector<16x36xf32> to vector<16x12xf32>
    %c2 = arith.constant 2 : index
    %c0_20 = arith.constant 0 : index
    %c0_21 = arith.constant 0 : index
    %23 = vector.load %arg5[%c2, %c0_20, %c0_21] : memref<3x12x384xf32, #tpu.memory_space<vmem>>, vector<1x12x384xf32>
    %24 = vector.shape_cast %23 : vector<1x12x384xf32> to vector<12x384xf32>
    %cst_22 = arith.constant dense<0.000000e+00> : vector<16x384xf32>
    %25 = tpu.matmul %22, %24, %cst_22 {dimension_numbers = #tpu.dot_dimension_numbers<[1], [0], [0], [1], [0, 0, 1, 1], [], []>} : vector<16x12xf32>, vector<12x384xf32>, vector<16x384xf32> -> vector<16x384xf32>
    %26 = arith.addf %5, %25 : vector<16x384xf32>
    %c1_23 = arith.constant 1 : index
    %c0_24 = arith.constant 0 : index
    %c0_25 = arith.constant 0 : index
    %27 = vector.load %arg7[%c1_23, %c0_24, %c0_25] : memref<2x16x384xf32, #tpu.memory_space<vmem>>, vector<1x16x384xf32>
    %28 = vector.shape_cast %27 : vector<1x16x384xf32> to vector<16x384xf32>
    %29 = vector.shape_cast %26 : vector<16x384xf32> to vector<1x16x384xf32>
    tpu.vector_store %arg7[%c1_23, %c0_24, %c0_25], %29 {strides = array<i32>} : memref<2x16x384xf32, #tpu.memory_space<vmem>>, vector<1x16x384xf32>,
    return
  }
  func.func @transform_0(%arg0: i32) -> (i32, i32) {
    %c0_i32 = arith.constant 0 : i32
    %c0_i32_0 = arith.constant 0 : i32
    return %arg0, %c0_i32 : i32, i32
  }
  func.func @transform_1(%arg0: i32) -> (i32, i32) {
    %c0_i32 = arith.constant 0 : i32
    %c0_i32_0 = arith.constant 0 : i32
    %c0_i32_1 = arith.constant 0 : i32
    return %c0_i32, %c0_i32_0 : i32, i32
  }
  func.func @transform_2(%arg0: i32) -> (i32, i32) {
    %c0_i32 = arith.constant 0 : i32
    %c0_i32_0 = arith.constant 0 : i32
    %c0_i32_1 = arith.constant 0 : i32
    return %c0_i32, %c0_i32_0 : i32, i32
  }
  func.func @transform_3(%arg0: i32) -> (i32, i32) {
    %c0_i32 = arith.constant 0 : i32
    %c0_i32_0 = arith.constant 0 : i32
    %c0_i32_1 = arith.constant 0 : i32
    return %c0_i32, %c0_i32_0 : i32, i32
  }
  func.func @transform_4(%arg0: i32) -> (i32, i32, i32) {
    %c0_i32 = arith.constant 0 : i32
    %c0_i32_0 = arith.constant 0 : i32
    %c0_i32_1 = arith.constant 0 : i32
    %c0_i32_2 = arith.constant 0 : i32
    return %c0_i32, %c0_i32_0, %c0_i32_1 : i32, i32, i32
  }
  func.func @transform_5(%arg0: i32) -> (i32, i32) {
    %c0_i32 = arith.constant 0 : i32
    %c0_i32_0 = arith.constant 0 : i32
    return %arg0, %c0_i32 : i32, i32
  }
  func.func @transform_6(%arg0: i32) -> (i32, i32, i32) {
    %c0_i32 = arith.constant 0 : i32
    %c0_i32_0 = arith.constant 0 : i32
    %c0_i32_1 = arith.constant 0 : i32
    return %c0_i32, %arg0, %c0_i32_0 : i32, i32, i32
  }
}

</mosaic_0001>

<llo_original>
// kernel: tpu_custom_call.1
$region0: #{tpu_custom_call.1}
  #allocation0 [shape = 'u32[]', space=smem, size = 0x4, offset = 0x4, fixed_abs, tag = 'smem constant byte address 0x4 - core index']
  #allocation1 [shape = 'u32[144,128]{1,0:T(1,128)}', space=vmem, size = 0x12000, scoped, tag = 'internal scratch']
  #allocation10 [shape = 's32[]', space=sflag, size = 0x4, offset = 0, fixed_abs, tag = 'sflag constant byte address 0x0 - dummy sync flag']
  %s0 = inlined_call_operand.vmem [shape: f32[48,64], index: 0, kind: input, shape index: {}]
  %s1 = inlined_call_operand.hbm [shape: f32[64,384], index: 1, kind: input, shape index: {}]
  %s2 = inlined_call_operand.vmem [shape: f32[1,384], index: 2, kind: input, shape index: {}]
  %s3 = inlined_call_operand.vmem [shape: f32[64,36], index: 3, kind: input, shape index: {}]
  %s4 = inlined_call_operand.hbm [shape: f32[3,12,384], index: 4, kind: input, shape index: {}]
  %s5 = inlined_call_operand.hbm [shape: f32[48,384], index: 5, kind: output, shape index: {0}]
  %s6 = inlined_call_operand.hbm [shape: f32[2,48,384], index: 6, kind: output, shape index: {1}]
  %7 = xla_tuple %s5, %s6
  %s8 = sld [smem:[#allocation0]]
  $region69: #{tpu_custom_call.1} parent=0
    _
  %s10 = ssub.s32 1, %s8
  %s11 = scalar_select 0, %s10, %s8
  $region1: #{tpu_custom_call.1} parent=0
    #allocation2 [shape = 'u8[98304]{0}', space=vmem, size = 0x18000, scoped, tag = 'input window, operand 1, single buffered']
    #allocation3 [shape = 's32[2]{0}', space=sflag, size = 0x8, scoped, tag = 'scoped memory for tpu_custom_call.1']
    #allocation4 [shape = 's32[2]{0}', space=sflag, size = 0x8, scoped, tag = 'scoped memory for tpu_custom_call.1']
    #allocation5 [shape = 'u8[73728]{0}', space=vmem, size = 0x12000, scoped, tag = 'input window, operand 4, single buffered']
    #allocation6 [shape = 's32[1]{0}', space=sflag, size = 0x4, scoped, tag = 'scoped memory for tpu_custom_call.1']
    #allocation7 [shape = 'u8[49152]{0}', space=vmem, size = 0xc000, scoped, tag = 'output window, operand 0']
    #allocation8 [shape = 'u8[98304]{0}', space=vmem, size = 0x18000, scoped, tag = 'output window, operand 1']
    #allocation9 [shape = 's32[2]{0}', space=sflag, size = 0x8, scoped, tag = 'scoped memory for tpu_custom_call.1']
    %12 = vsyncpa [#allocation3], 0
    %13 = vsyncpa [#allocation6], 0
    %14 = vsyncpa [#allocation4], 0
    %s15 = scalar_lea.sflag [#allocation4], 1
    %16 = vsyncpa %s15, 0
    %17 = vsyncpa [#allocation9], 0
    %s18 = scalar_lea.sflag [#allocation9], 1
    %19 = vsyncpa %s18, 0
    loop: start=0, step=1, limit=5
    $region2: #{tpu_custom_call.1} parent=1 // loop_pre_header
      _
    $region3: #{tpu_custom_call.1} parent=1 // loop_header
      %s21 = sphi 0, %s25
      %p22 = scmp.ge.s32.totalorder %s21, 5
      %s31 = sphi 0, %s33
      %s34 = sphi 0, %s31
      %s35 = sphi 0, %s34
      %s51 = sphi 0, %s35
      %s55 = sphi 0, %s55
      %s57 = sphi 0, %s55
      %s58 = sphi 0, %s57
      %s72 = sphi 0, %s58
      %s76 = sphi 0, %s76
      %s78 = sphi 0, %s76
      %s79 = sphi 0, %s78
      %s93 = sphi 0, %s79
      %s97 = sphi 0, %s97
      %s99 = sphi 0, %s97
      %s100 = sphi 0, %s99
      %s114 = sphi 0, %s100
      %s118 = sphi 0, %s118
      %s120 = sphi 0, %s118
      %s121 = sphi 0, %s120
      %s135 = sphi 0, %s121
      %s141 = sphi 0, %s143
      %s144 = sphi 0, %s141
      %s145 = sphi 0, %s144
      %s161 = sphi 0, %s145
      %s167 = sphi 0, %s169
      %s170 = sphi 0, %s167
      %s171 = sphi 0, %s170
      %s187 = sphi 0, %s171
    $region4: #{tpu_custom_call.1} parent=1 // loop_header_branch
      %24 = sbr.rel (%p22) target = $region8
    $region5: #{tpu_custom_call.1} parent=1 // loop_body
      %s26 = ssub.s32 %s21, 1
      %s27 = ssub.s32 %s21, 2
      %s28 = sadd.s32 %s21, 1
      %s29 = ssub.s32 %s21, %s28
      %p30 = scmp.eq.s32.totalorder %s29, 0
      %s32 = sadd.s32 %s31, 1
      %s33 = scalar_select %p30, %s31, %s32
      %p36 = pneg %p30
      %p37 = scmp.eq.s32.totalorder %s21, 2
      %p38 = por %p36, %p37
      %p39 = scmp.ne.s32.totalorder %s31, %s34
      %p40 = scmp.eq.s32.totalorder %s21, 0
      %p41 = por %p39, %p40
      %p42 = scmp.ne.s32.totalorder %s31, %s34
      %p43 = scmp.eq.s32.totalorder %s26, 2
      %p44 = por %p42, %p43
      %p45 = scmp.ne.s32.totalorder %s34, %s35
      %p46 = scmp.eq.s32.totalorder %s26, 0
      %p47 = por %p45, %p46
      %p48 = scmp.ne.s32.totalorder %s34, %s35
      %p49 = scmp.eq.s32.totalorder %s27, 2
      %p50 = por %p48, %p49
      %p52 = scmp.ne.s32.totalorder %s35, %s51
      %p53 = scmp.eq.s32.totalorder %s27, 0
      %p54 = por %p52, %p53
      %s56 = sadd.s32 %s55, 1
      %p59 = scmp.eq.s32.totalorder %s21, 2
      %p60 = scmp.ne.s32.totalorder %s55, %s57
      %p61 = scmp.eq.s32.totalorder %s21, 0
      %p62 = por %p60, %p61
      %p63 = scmp.ne.s32.totalorder %s55, %s57
      %p64 = scmp.eq.s32.totalorder %s26, 2
      %p65 = por %p63, %p64
      %p66 = scmp.ne.s32.totalorder %s57, %s58
      %p67 = scmp.eq.s32.totalorder %s26, 0
      %p68 = por %p66, %p67
      %p69 = scmp.ne.s32.totalorder %s57, %s58
      %p70 = scmp.eq.s32.totalorder %s27, 2
      %p71 = por %p69, %p70
      %p73 = scmp.ne.s32.totalorder %s58, %s72
      %p74 = scmp.eq.s32.totalorder %s27, 0
      %p75 = por %p73, %p74
      %s77 = sadd.s32 %s76, 1
      %p80 = scmp.eq.s32.totalorder %s21, 2
      %p81 = scmp.ne.s32.totalorder %s76, %s78
      %p82 = scmp.eq.s32.totalorder %s21, 0
      %p83 = por %p81, %p82
      %p84 = scmp.ne.s32.totalorder %s76, %s78
      %p85 = scmp.eq.s32.totalorder %s26, 2
      %p86 = por %p84, %p85
      %p87 = scmp.ne.s32.totalorder %s78, %s79
      %p88 = scmp.eq.s32.totalorder %s26, 0
      %p89 = por %p87, %p88
      %p90 = scmp.ne.s32.totalorder %s78, %s79
      %p91 = scmp.eq.s32.totalorder %s27, 2
      %p92 = por %p90, %p91
      %p94 = scmp.ne.s32.totalorder %s79, %s93
      %p95 = scmp.eq.s32.totalorder %s27, 0
      %p96 = por %p94, %p95
      %s98 = sadd.s32 %s97, 1
      %p101 = scmp.eq.s32.totalorder %s21, 2
      %p102 = scmp.ne.s32.totalorder %s97, %s99
      %p103 = scmp.eq.s32.totalorder %s21, 0
      %p104 = por %p102, %p103
      %p105 = scmp.ne.s32.totalorder %s97, %s99
      %p106 = scmp.eq.s32.totalorder %s26, 2
      %p107 = por %p105, %p106
      %p108 = scmp.ne.s32.totalorder %s99, %s100
      %p109 = scmp.eq.s32.totalorder %s26, 0
      %p110 = por %p108, %p109
      %p111 = scmp.ne.s32.totalorder %s99, %s100
      %p112 = scmp.eq.s32.totalorder %s27, 2
      %p113 = por %p111, %p112
      %p115 = scmp.ne.s32.totalorder %s100, %s114
      %p116 = scmp.eq.s32.totalorder %s27, 0
      %p117 = por %p115, %p116
      %s119 = sadd.s32 %s118, 1
      %p122 = scmp.eq.s32.totalorder %s21, 2
      %p123 = scmp.ne.s32.totalorder %s118, %s120
      %p124 = scmp.eq.s32.totalorder %s21, 0
      %p125 = por %p123, %p124
      %p126 = scmp.ne.s32.totalorder %s118, %s120
      %p127 = scmp.eq.s32.totalorder %s26, 2
      %p128 = por %p126, %p127
      %p129 = scmp.ne.s32.totalorder %s120, %s121
      %p130 = scmp.eq.s32.totalorder %s26, 0
      %p131 = por %p129, %p130
      %p132 = scmp.ne.s32.totalorder %s120, %s121
      %p133 = scmp.eq.s32.totalorder %s27, 2
      %p134 = por %p132, %p133
      %p136 = scmp.ne.s32.totalorder %s121, %s135
      %p137 = scmp.eq.s32.totalorder %s27, 0
      %p138 = por %p136, %p137
      %s139 = ssub.s32 %s21, %s28
      %p140 = scmp.eq.s32.totalorder %s139, 0
      %s142 = sadd.s32 %s141, 1
      %s143 = scalar_select %p140, %s141, %s142
      %p146 = pneg %p140
      %p147 = scmp.eq.s32.totalorder %s21, 2
      %p148 = por %p146, %p147
      %p149 = scmp.ne.s32.totalorder %s141, %s144
      %p150 = scmp.eq.s32.totalorder %s21, 0
      %p151 = por %p149, %p150
      %p152 = scmp.ne.s32.totalorder %s141, %s144
      %p153 = scmp.eq.s32.totalorder %s26, 2
      %p154 = por %p152, %p153
      %p155 = scmp.ne.s32.totalorder %s144, %s145
      %p156 = scmp.eq.s32.totalorder %s26, 0
      %p157 = por %p155, %p156
      %p158 = scmp.ne.s32.totalorder %s144, %s145
      %p159 = scmp.eq.s32.totalorder %s27, 2
      %p160 = por %p158, %p159
      %p162 = scmp.ne.s32.totalorder %s145, %s161
      %p163 = scmp.eq.s32.totalorder %s27, 0
      %p164 = por %p162, %p163
      %s165 = ssub.s32 %s21, %s28
      %p166 = scmp.eq.s32.totalorder %s165, 0
      %s168 = sadd.s32 %s167, 1
      %s169 = scalar_select %p166, %s167, %s168
      %p172 = pneg %p166
      %p173 = scmp.eq.s32.totalorder %s21, 2
      %p174 = por %p172, %p173
      %p175 = scmp.ne.s32.totalorder %s167, %s170
      %p176 = scmp.eq.s32.totalorder %s21, 0
      %p177 = por %p175, %p176
      %p178 = scmp.ne.s32.totalorder %s167, %s170
      %p179 = scmp.eq.s32.totalorder %s26, 2
      %p180 = por %p178, %p179
      %p181 = scmp.ne.s32.totalorder %s170, %s171
      %p182 = scmp.eq.s32.totalorder %s26, 0
      %p183 = por %p181, %p182
      %p184 = scmp.ne.s32.totalorder %s170, %s171
      %p185 = scmp.eq.s32.totalorder %s27, 2
      %p186 = por %p184, %p185
      %p188 = scmp.ne.s32.totalorder %s171, %s187
      %p189 = scmp.eq.s32.totalorder %s27, 0
      %p190 = por %p188, %p189
      %p191 = scmp.le.s32.totalorder 1, %s21
      %p192 = scmp.lt.s32.totalorder %s21, 4
      %p193 = pnand %p191, %p192
      %p194 = pneg %p193
      // Predicated region
      $region9: #{tpu_custom_call.1} parent=5 // pred_check
        _
      $region10: #{tpu_custom_call.1} parent=5 // pred_check_branch
        %196 = sbr.rel (%p193) target = $region12
      $region11: #{tpu_custom_call.1} parent=5 // pred_region
        %s197 = ssub.s32 %s21, 1
        // Predicated region
        $region13: #{tpu_custom_call.1} parent=11 // pred_check
          %p198 = pneg %p68
        $region14: #{tpu_custom_call.1} parent=11 // pred_check_branch
          %200 = sbr.rel (%p198) target = $region16
        $region15: #{tpu_custom_call.1} parent=11 // pred_region
          %s202 = ssub.s32 3072, 3072
          %203 = vsyncadd [#allocation3], %s202
          %s204 = sshll.u32 [#allocation2], 4
          %s205 = int_to_ptr.vmem [resolvable:$true] %s204
          %210 = dma.hbm_to_vmem [thread:$0]  %s1, 3072, %s205, [#allocation3], 384, 384, 24
        $region16: #{tpu_custom_call.1} parent=11 // pred_fallthru
          _
        // Predicated region
        $region17: #{tpu_custom_call.1} parent=11 // pred_check
          %p211 = pneg %p89
        $region18: #{tpu_custom_call.1} parent=11 // pred_check_branch
          %213 = sbr.rel (%p211) target = $region20
        $region19: #{tpu_custom_call.1} parent=11 // pred_region
          _
        $region20: #{tpu_custom_call.1} parent=11 // pred_fallthru
          _
        // Predicated region
        $region21: #{tpu_custom_call.1} parent=11 // pred_check
          %p214 = pneg %p110
        $region22: #{tpu_custom_call.1} parent=11 // pred_check_branch
          %216 = sbr.rel (%p214) target = $region24
        $region23: #{tpu_custom_call.1} parent=11 // pred_region
          _
        $region24: #{tpu_custom_call.1} parent=11 // pred_fallthru
          _
        // Predicated region
        $region25: #{tpu_custom_call.1} parent=11 // pred_check
          %p217 = pneg %p131
        $region26: #{tpu_custom_call.1} parent=11 // pred_check_branch
          %219 = sbr.rel (%p217) target = $region28
        $region27: #{tpu_custom_call.1} parent=11 // pred_region
          %s221 = ssub.s32 2304, 2304
          %222 = vsyncadd [#allocation6], %s221
          %s223 = sshll.u32 [#allocation5], 4
          %s224 = int_to_ptr.vmem [resolvable:$true] %s223
          %229 = dma.hbm_to_vmem [thread:$0]  %s4, 2304, %s224, [#allocation6], 384, 384, 24
        $region28: #{tpu_custom_call.1} parent=11 // pred_fallthru
          _
      $region12: #{tpu_custom_call.1} parent=5 // pred_fallthru
        _
      %p230 = scmp.lt.s32.totalorder %s21, 3
      // Predicated region
      $region29: #{tpu_custom_call.1} parent=5 // pred_check
        %p231 = pneg %p230
      $region30: #{tpu_custom_call.1} parent=5 // pred_check_branch
        %233 = sbr.rel (%p231) target = $region32
      $region31: #{tpu_custom_call.1} parent=5 // pred_region
        // Predicated region
        $region33: #{tpu_custom_call.1} parent=31 // pred_check
          %p234 = pneg %p41
        $region34: #{tpu_custom_call.1} parent=31 // pred_check_branch
          %236 = sbr.rel (%p234) target = $region36
        $region35: #{tpu_custom_call.1} parent=31 // pred_region
          %s237 = smul.u32 2, %s21
          %p238 = scmp.lt.s32.totalorder %s237, 5
          %s239 = scalar_select %p238, %s237, 5
          %s240 = smul.addr %s239, 8
          %s241 = scalar_lea.vmem %s0, %s240
          %s242 = smul.u32 2, %s21
        $region36: #{tpu_custom_call.1} parent=31 // pred_fallthru
          _
      $region32: #{tpu_custom_call.1} parent=5 // pred_fallthru
        _
      %p243 = scmp.le.s32.totalorder 1, %s21
      %p244 = scmp.lt.s32.totalorder %s21, 4
      %p245 = pnand %p243, %p244
      %p246 = pneg %p245
      // Predicated region
      $region37: #{tpu_custom_call.1} parent=5 // pred_check
        _
      $region38: #{tpu_custom_call.1} parent=5 // pred_check_branch
        %248 = sbr.rel (%p245) target = $region40
      $region39: #{tpu_custom_call.1} parent=5 // pred_region
        %s249 = ssub.s32 %s21, 1
        // Predicated region
        $region41: #{tpu_custom_call.1} parent=39 // pred_check
          %p250 = pneg %p68
        $region42: #{tpu_custom_call.1} parent=39 // pred_check_branch
          %252 = sbr.rel (%p250) target = $region44
        $region43: #{tpu_custom_call.1} parent=39 // pred_region
          %253 = dma.done [#allocation3], 3072
        $region44: #{tpu_custom_call.1} parent=39 // pred_fallthru
          _
        // Predicated region
        $region45: #{tpu_custom_call.1} parent=39 // pred_check
          %p254 = pneg %p131
        $region46: #{tpu_custom_call.1} parent=39 // pred_check_branch
          %256 = sbr.rel (%p254) target = $region48
        $region47: #{tpu_custom_call.1} parent=39 // pred_region
          %257 = dma.done [#allocation6], 2304
        $region48: #{tpu_custom_call.1} parent=39 // pred_fallthru
          _
        %s258 = smul.u32 2, %s26
        %p259 = scmp.lt.s32.totalorder %s258, 5
        %s260 = scalar_select %p259, %s258, 5
        %s261 = smul.addr %s260, 8
        %s262 = scalar_lea.vmem %s0, %s261
        %p263 = pneg %p47
        %p264 = pneg %p44
        %p265 = pneg %p68
        %p266 = pneg %p65
        %p267 = pneg %p89
        %p268 = pneg %p86
        %p269 = pneg %p110
        %p270 = pneg %p107
        %p271 = pneg %p131
        %p272 = pneg %p128
        %p273 = pneg %p157
        %p274 = pneg %p154
        %s275 = sand.u32 %s144, 1
        %s276 = scalar_lea.sflag [#allocation4], %s275
        %s277 = sand.u32 %s144, 1
        %s278 = smul.addr %s277, 48
        %s279 = scalar_lea.vmem [#allocation7], %s278
        %p280 = pneg %p183
        %p281 = pneg %p180
        %s282 = sand.u32 %s170, 1
        %s283 = scalar_lea.sflag [#allocation9], %s282
        %s284 = sand.u32 %s170, 1
        %s285 = smul.addr %s284, 96
        %s286 = scalar_lea.vmem [#allocation8], %s285
        %s287 = smul.u32 2, %s26
        %p288 = scmp.lt.s32.totalorder %s287, 5
        %s289 = scalar_select %p288, %s287, 5
        %s290 = smul.addr %s289, 8
        %s291 = scalar_lea.vmem %s0, %s290
        %s292 = smul.u32 2, %s26
        %s293 = smul.u32 2, %s26
        %s294 = smul.u32 2, %s26
        %v295 = vld [vmem:[%s291] sm:$0xff]
        %v296 = vld [vmem:[%s291 + $0x8] sm:$0xff]
        %v297 = vld [vmem:[#allocation2] sm:$0xff]
        %v298 = vld [vmem:[#allocation2 + $0x8] sm:$0xff]
        %v299 = vld [vmem:[#allocation2 + $0x10] sm:$0xff]
        %v300 = vld [vmem:[#allocation2 + $0x18] sm:$0xff]
        %v301 = vld [vmem:[#allocation2 + $0x20] sm:$0xff]
        %v302 = vld [vmem:[#allocation2 + $0x28] sm:$0xff]
        %v303 = vld [vmem:[#allocation2 + $0x30] sm:$0xff]
        %v304 = vld [vmem:[#allocation2 + $0x38] sm:$0xff]
        %v305 = vld [vmem:[#allocation2 + $0x40] sm:$0xff]
        %v306 = vld [vmem:[#allocation2 + $0x48] sm:$0xff]
        %v307 = vld [vmem:[#allocation2 + $0x50] sm:$0xff]
        %v308 = vld [vmem:[#allocation2 + $0x58] sm:$0xff]
        %v309 = vld [vmem:[#allocation2 + $0x60] sm:$0xff]
        %v310 = vld [vmem:[#allocation2 + $0x68] sm:$0xff]
        %v311 = vld [vmem:[#allocation2 + $0x70] sm:$0xff]
        %v312 = vld [vmem:[#allocation2 + $0x78] sm:$0xff]
        %v313 = vld [vmem:[#allocation2 + $0x80] sm:$0xff]
        %v314 = vld [vmem:[#allocation2 + $0x88] sm:$0xff]
        %v315 = vld [vmem:[#allocation2 + $0x90] sm:$0xff]
        %v316 = vld [vmem:[#allocation2 + $0x98] sm:$0xff]
        %v317 = vld [vmem:[#allocation2 + $0xa0] sm:$0xff]
        %v318 = vld [vmem:[#allocation2 + $0xa8] sm:$0xff]
        %v319 = vld [vmem:[#allocation2 + $0xb0] sm:$0xff]
        %v320 = vld [vmem:[#allocation2 + $0xb8] sm:$0xff]
        %v321 = vld [vmem:[%s2] sm:$0x7]
        %v323 = vlaneseq
        %v324 = vshrl.u32 %v323, 7
        %v325 = vsub.s32 0, %v324
        %v326 = vrot.slane %v321, %v325
        %v327 = vlaneseq
        %v328 = vshrl.u32 %v327, 7
        %v329 = vsub.s32 1, %v328
        %v330 = vrot.slane %v321, %v329
        %v331 = vlaneseq
        %v332 = vshrl.u32 %v331, 7
        %v333 = vsub.s32 2, %v332
        %v334 = vrot.slane %v321, %v333
        %vm338 = vcmask 523264
        %v340 = vsel %vm338, %v295, 0
        %v343 = vsel %vm338, %v296, 0
        %345 = vmatprep.subr.mxu0 0.0
        %346 = vmatpush1.msra.mxu0 0.0
        %347 = vmatprep.subr.mxu0 0.0
        %348 = vmatpush1.msra.mxu0 0.0
        %349 = vmatprep.subr.mxu0 0.0
        %350 = vmatpush1.msra.mxu0 0.0
        %351 = vmatprep.subr.mxu0 0.0
        %352 = vmatpush1.msra.mxu0 0.0
        %353 = vmatprep.subr.mxu0 0.0
        %354 = vmatpush1.msra.mxu0 0.0
        %355 = vmatprep.subr.mxu0 0.0
        %356 = vmatpush1.msra.mxu0 0.0
        %357 = vmatprep.subr.mxu0 0.0
        %358 = vmatpush1.msra.mxu0 0.0
        %359 = vmatprep.subr.mxu0 0.0
        %360 = vmatpush1.msra.mxu0 0.0
        %361 = vmatprep.subr.mxu0 %v319
        %362 = vmatpush1.msra.mxu0 %v318
        %363 = vmatprep.subr.mxu0 %v316
        %364 = vmatpush1.msra.mxu0 %v315
        %365 = vmatprep.subr.mxu0 %v313
        %366 = vmatpush1.msra.mxu0 %v312
        %367 = vmatprep.subr.mxu0 %v310
        %368 = vmatpush1.msra.mxu0 %v309
        %369 = vmatprep.subr.mxu0 %v307
        %370 = vmatpush1.msra.mxu0 %v306
        %371 = vmatprep.subr.mxu0 %v304
        %372 = vmatpush1.msra.mxu0 %v303
        %373 = vmatprep.subr.mxu0 %v301
        %374 = vmatpush1.msra.mxu0 %v300
        %375 = vmatprep.subr.mxu0 %v298
        %376 = vmatpush1.msra.mxu0 %v297
        %377 = vmatprep.subr.mxu0 0.0
        %378 = vmatpush2.msra.mxu0 0.0
        %379 = vmatprep.subr.mxu0 0.0
        %380 = vmatpush2.msra.mxu0 0.0
        %381 = vmatprep.subr.mxu0 0.0
        %382 = vmatpush2.msra.mxu0 0.0
        %383 = vmatprep.subr.mxu0 0.0
        %384 = vmatpush2.msra.mxu0 0.0
        %385 = vmatprep.subr.mxu0 0.0
        %386 = vmatpush2.msra.mxu0 0.0
        %387 = vmatprep.subr.mxu0 0.0
        %388 = vmatpush2.msra.mxu0 0.0
        %389 = vmatprep.subr.mxu0 0.0
        %390 = vmatpush2.msra.mxu0 0.0
        %391 = vmatprep.subr.mxu0 0.0
        %392 = vmatpush2.msra.mxu0 0.0
        %393 = vmatprep.subr.mxu0 0.0
        %394 = vmatpush2.msra.mxu0 0.0
        %395 = vmatprep.subr.mxu0 0.0
        %396 = vmatpush2.msra.mxu0 0.0
        %397 = vmatprep.subr.mxu0 0.0
        %398 = vmatpush2.msra.mxu0 0.0
        %399 = vmatprep.subr.mxu0 0.0
        %400 = vmatpush2.msra.mxu0 0.0
        %401 = vmatprep.subr.mxu0 0.0
        %402 = vmatpush2.msra.mxu0 0.0
        %403 = vmatprep.subr.mxu0 0.0
        %404 = vmatpush2.msra.mxu0 0.0
        %405 = vmatprep.subr.mxu0 0.0
        %406 = vmatpush2.msra.mxu0 0.0
        %407 = vmatprep.subr.mxu0 0.0
        %408 = vmatpush2.msra.mxu0 0.0
        %409 = vmatprep.mubr.f32.mxu0 0.0
        %410 = vmatmul.mubr.f32.gmra.mxu0 %v340
        %v411 = vpop.f32.mrf.mxu0
        %v412 = vadd.f32 %v326, %v411
        %v413 = vpop.f32.mrf.mxu0
        %v414 = vadd.f32 %v330, %v413
        %415 = vmatprep.mubr.f32.mxu0 0.0
        %416 = vmatmul.mubr.f32.gmra.mxu0 %v343
        %v417 = vpop.f32.mrf.mxu0
        %v418 = vadd.f32 %v326, %v417
        %v419 = vpop.f32.mrf.mxu0
        %v420 = vadd.f32 %v330, %v419
        %421 = vdwg.mxu0
        %422 = vmatprep.subr.mxu0 0.0
        %423 = vmatpush1.msra.mxu0 0.0
        %424 = vmatprep.subr.mxu0 0.0
        %425 = vmatpush1.msra.mxu0 0.0
        %426 = vmatprep.subr.mxu0 0.0
        %427 = vmatpush1.msra.mxu0 0.0
        %428 = vmatprep.subr.mxu0 0.0
        %429 = vmatpush1.msra.mxu0 0.0
        %430 = vmatprep.subr.mxu0 0.0
        %431 = vmatpush1.msra.mxu0 0.0
        %432 = vmatprep.subr.mxu0 0.0
        %433 = vmatpush1.msra.mxu0 0.0
        %434 = vmatprep.subr.mxu0 0.0
        %435 = vmatpush1.msra.mxu0 0.0
        %436 = vmatprep.subr.mxu0 0.0
        %437 = vmatpush1.msra.mxu0 0.0
        %438 = vmatprep.subr.mxu0 0.0
        %439 = vmatpush1.msra.mxu0 %v320
        %440 = vmatprep.subr.mxu0 0.0
        %441 = vmatpush1.msra.mxu0 %v317
        %442 = vmatprep.subr.mxu0 0.0
        %443 = vmatpush1.msra.mxu0 %v314
        %444 = vmatprep.subr.mxu0 0.0
        %445 = vmatpush1.msra.mxu0 %v311
        %446 = vmatprep.subr.mxu0 0.0
        %447 = vmatpush1.msra.mxu0 %v308
        %448 = vmatprep.subr.mxu0 0.0
        %449 = vmatpush1.msra.mxu0 %v305
        %450 = vmatprep.subr.mxu0 0.0
        %451 = vmatpush1.msra.mxu0 %v302
        %452 = vmatprep.subr.mxu0 0.0
        %453 = vmatpush1.msra.mxu0 %v299
        %454 = vmatprep.subr.mxu0 0.0
        %455 = vmatpush2.msra.mxu0 0.0
        %456 = vmatprep.subr.mxu0 0.0
        %457 = vmatpush2.msra.mxu0 0.0
        %458 = vmatprep.subr.mxu0 0.0
        %459 = vmatpush2.msra.mxu0 0.0
        %460 = vmatprep.subr.mxu0 0.0
        %461 = vmatpush2.msra.mxu0 0.0
        %462 = vmatprep.subr.mxu0 0.0
        %463 = vmatpush2.msra.mxu0 0.0
        %464 = vmatprep.subr.mxu0 0.0
        %465 = vmatpush2.msra.mxu0 0.0
        %466 = vmatprep.subr.mxu0 0.0
        %467 = vmatpush2.msra.mxu0 0.0
        %468 = vmatprep.subr.mxu0 0.0
        %469 = vmatpush2.msra.mxu0 0.0
        %470 = vmatprep.subr.mxu0 0.0
        %471 = vmatpush2.msra.mxu0 0.0
        %472 = vmatprep.subr.mxu0 0.0
        %473 = vmatpush2.msra.mxu0 0.0
        %474 = vmatprep.subr.mxu0 0.0
        %475 = vmatpush2.msra.mxu0 0.0
        %476 = vmatprep.subr.mxu0 0.0
        %477 = vmatpush2.msra.mxu0 0.0
        %478 = vmatprep.subr.mxu0 0.0
        %479 = vmatpush2.msra.mxu0 0.0
        %480 = vmatprep.subr.mxu0 0.0
        %481 = vmatpush2.msra.mxu0 0.0
        %482 = vmatprep.subr.mxu0 0.0
        %483 = vmatpush2.msra.mxu0 0.0
        %484 = vmatprep.subr.mxu0 0.0
        %485 = vmatpush2.msra.mxu0 0.0
        %486 = vmatprep.mubr.f32.mxu0 0.0
        %487 = vmatmul.mubr.f32.gmra.mxu0 %v340
        %v488 = vpop.f32.mrf.mxu0
        %v489 = vadd.f32 %v334, %v488
        %v490 = vpop.f32.mrf.mxu0
        %491 = vmatprep.mubr.f32.mxu0 0.0
        %492 = vmatmul.mubr.f32.gmra.mxu0 %v343
        %v493 = vpop.f32.mrf.mxu0
        %v494 = vadd.f32 %v334, %v493
        %v495 = vpop.f32.mrf.mxu0
        %496 = vdwg.mxu0
        %v497 = vld [vmem:[%s3] sm:$0xff]
        %v498 = vld [vmem:[%s3 + $0x8] sm:$0xff]
        %v499 = vld [vmem:[%s3 + $0x10] sm:$0xff]
        %v500 = vld [vmem:[%s3 + $0x18] sm:$0xff]
        %v501 = vld [vmem:[%s3 + $0x20] sm:$0xff]
        %v502 = vld [vmem:[%s3 + $0x28] sm:$0xff]
        %v503 = vld [vmem:[%s3 + $0x30] sm:$0xff]
        %v504 = vld [vmem:[%s3 + $0x38] sm:$0xff]
        %505 = vmatprep.subr.mxu0 0.0
        %506 = vmatpush1.msra.mxu0 0.0
        %507 = vmatprep.subr.mxu0 0.0
        %508 = vmatpush1.msra.mxu0 0.0
        %509 = vmatprep.subr.mxu0 0.0
        %510 = vmatpush1.msra.mxu0 0.0
        %511 = vmatprep.subr.mxu0 0.0
        %512 = vmatpush1.msra.mxu0 0.0
        %513 = vmatprep.subr.mxu0 0.0
        %514 = vmatpush1.msra.mxu0 0.0
        %515 = vmatprep.subr.mxu0 0.0
        %516 = vmatpush1.msra.mxu0 0.0
        %517 = vmatprep.subr.mxu0 0.0
        %518 = vmatpush1.msra.mxu0 0.0
        %519 = vmatprep.subr.mxu0 0.0
        %520 = vmatpush1.msra.mxu0 0.0
        %521 = vmatprep.subr.mxu0 0.0
        %522 = vmatpush1.msra.mxu0 %v504
        %523 = vmatprep.subr.mxu0 0.0
        %524 = vmatpush1.msra.mxu0 %v503
        %525 = vmatprep.subr.mxu0 0.0
        %526 = vmatpush1.msra.mxu0 %v502
        %527 = vmatprep.subr.mxu0 0.0
        %528 = vmatpush1.msra.mxu0 %v501
        %529 = vmatprep.subr.mxu0 0.0
        %530 = vmatpush1.msra.mxu0 %v500
        %531 = vmatprep.subr.mxu0 0.0
        %532 = vmatpush1.msra.mxu0 %v499
        %533 = vmatprep.subr.mxu0 0.0
        %534 = vmatpush1.msra.mxu0 %v498
        %535 = vmatprep.subr.mxu0 0.0
        %536 = vmatpush1.msra.mxu0 %v497
        %537 = vmatprep.subr.mxu0 0.0
        %538 = vmatpush2.msra.mxu0 0.0
        %539 = vmatprep.subr.mxu0 0.0
        %540 = vmatpush2.msra.mxu0 0.0
        %541 = vmatprep.subr.mxu0 0.0
        %542 = vmatpush2.msra.mxu0 0.0
        %543 = vmatprep.subr.mxu0 0.0
        %544 = vmatpush2.msra.mxu0 0.0
        %545 = vmatprep.subr.mxu0 0.0
        %546 = vmatpush2.msra.mxu0 0.0
        %547 = vmatprep.subr.mxu0 0.0
        %548 = vmatpush2.msra.mxu0 0.0
        %549 = vmatprep.subr.mxu0 0.0
        %550 = vmatpush2.msra.mxu0 0.0
        %551 = vmatprep.subr.mxu0 0.0
        %552 = vmatpush2.msra.mxu0 0.0
        %553 = vmatprep.subr.mxu0 0.0
        %554 = vmatpush2.msra.mxu0 0.0
        %555 = vmatprep.subr.mxu0 0.0
        %556 = vmatpush2.msra.mxu0 0.0
        %557 = vmatprep.subr.mxu0 0.0
        %558 = vmatpush2.msra.mxu0 0.0
        %559 = vmatprep.subr.mxu0 0.0
        %560 = vmatpush2.msra.mxu0 0.0
        %561 = vmatprep.subr.mxu0 0.0
        %562 = vmatpush2.msra.mxu0 0.0
        %563 = vmatprep.subr.mxu0 0.0
        %564 = vmatpush2.msra.mxu0 0.0
        %565 = vmatprep.subr.mxu0 0.0
        %566 = vmatpush2.msra.mxu0 0.0
        %567 = vmatprep.subr.mxu0 0.0
        %568 = vmatpush2.msra.mxu0 0.0
        %569 = vmatprep.mubr.f32.mxu0 0.0
        %570 = vmatmul.mubr.f32.gmra.mxu0 %v340
        %v571 = vpop.f32.mrf.mxu0
        %v572 = vadd.f32 0.0, %v571
        %v573 = vpop.f32.mrf.mxu0
        %574 = vmatprep.mubr.f32.mxu0 0.0
        %575 = vmatmul.mubr.f32.gmra.mxu0 %v343
        %v576 = vpop.f32.mrf.mxu0
        %v577 = vadd.f32 0.0, %v576
        %v578 = vpop.f32.mrf.mxu0
        %579 = vdwg.mxu0
        %v580 = vld [vmem:[#allocation5] sm:$0xff]
        %v581 = vld [vmem:[#allocation5 + $0x8] sm:$0xff]
        %v582 = vld [vmem:[#allocation5 + $0x10] sm:$0xff]
        %v583 = vld [vmem:[#allocation5 + $0x18] sm:$0xf]
        %v584 = vld [vmem:[#allocation5 + $0x20] sm:$0xf]
        %v585 = vld [vmem:[#allocation5 + $0x28] sm:$0xf]
        %vm586 = vcmask 97280
        %v588 = vsel %vm586, %v572, 0
        %v591 = vsel %vm586, %v577, 0
        %vm593 = vcmask 1043456
        %v595 = vsel %vm593, %v583, 0
        %v598 = vsel %vm593, %v584, 0
        %v601 = vsel %vm593, %v585, 0
        %603 = vmatprep.subr.mxu0 0.0
        %604 = vmatpush1.msra.mxu0 0.0
        %605 = vmatprep.subr.mxu0 0.0
        %606 = vmatpush1.msra.mxu0 0.0
        %607 = vmatprep.subr.mxu0 0.0
        %608 = vmatpush1.msra.mxu0 0.0
        %609 = vmatprep.subr.mxu0 0.0
        %610 = vmatpush1.msra.mxu0 0.0
        %611 = vmatprep.subr.mxu0 0.0
        %612 = vmatpush1.msra.mxu0 0.0
        %613 = vmatprep.subr.mxu0 0.0
        %614 = vmatpush1.msra.mxu0 0.0
        %615 = vmatprep.subr.mxu0 0.0
        %616 = vmatpush1.msra.mxu0 0.0
        %617 = vmatprep.subr.mxu0 0.0
        %618 = vmatpush1.msra.mxu0 0.0
        %619 = vmatprep.subr.mxu0 0.0
        %620 = vmatpush1.msra.mxu0 0.0
        %621 = vmatprep.subr.mxu0 0.0
        %622 = vmatpush1.msra.mxu0 0.0
        %623 = vmatprep.subr.mxu0 0.0
        %624 = vmatpush1.msra.mxu0 0.0
        %625 = vmatprep.subr.mxu0 0.0
        %626 = vmatpush1.msra.mxu0 0.0
        %627 = vmatprep.subr.mxu0 0.0
        %628 = vmatpush1.msra.mxu0 0.0
        %629 = vmatprep.subr.mxu0 0.0
        %630 = vmatpush1.msra.mxu0 0.0
        %631 = vmatprep.subr.mxu0 %v598
        %632 = vmatpush1.msra.mxu0 %v595
        %633 = vmatprep.subr.mxu0 %v581
        %634 = vmatpush1.msra.mxu0 %v580
        %635 = vmatprep.subr.mxu0 0.0
        %636 = vmatpush2.msra.mxu0 0.0
        %637 = vmatprep.subr.mxu0 0.0
        %638 = vmatpush2.msra.mxu0 0.0
        %639 = vmatprep.subr.mxu0 0.0
        %640 = vmatpush2.msra.mxu0 0.0
        %641 = vmatprep.subr.mxu0 0.0
        %642 = vmatpush2.msra.mxu0 0.0
        %643 = vmatprep.subr.mxu0 0.0
        %644 = vmatpush2.msra.mxu0 0.0
        %645 = vmatprep.subr.mxu0 0.0
        %646 = vmatpush2.msra.mxu0 0.0
        %647 = vmatprep.subr.mxu0 0.0
        %648 = vmatpush2.msra.mxu0 0.0
        %649 = vmatprep.subr.mxu0 0.0
        %650 = vmatpush2.msra.mxu0 0.0
        %651 = vmatprep.subr.mxu0 0.0
        %652 = vmatpush2.msra.mxu0 0.0
        %653 = vmatprep.subr.mxu0 0.0
        %654 = vmatpush2.msra.mxu0 0.0
        %655 = vmatprep.subr.mxu0 0.0
        %656 = vmatpush2.msra.mxu0 0.0
        %657 = vmatprep.subr.mxu0 0.0
        %658 = vmatpush2.msra.mxu0 0.0
        %659 = vmatprep.subr.mxu0 0.0
        %660 = vmatpush2.msra.mxu0 0.0
        %661 = vmatprep.subr.mxu0 0.0
        %662 = vmatpush2.msra.mxu0 0.0
        %663 = vmatprep.subr.mxu0 0.0
        %664 = vmatpush2.msra.mxu0 0.0
        %665 = vmatprep.subr.mxu0 0.0
        %666 = vmatpush2.msra.mxu0 0.0
        %667 = vmatprep.mubr.f32.mxu0 0.0
        %668 = vmatmul.mubr.f32.gmra.mxu0 %v588
        %v669 = vpop.f32.mrf.mxu0
        %v670 = vadd.f32 0.0, %v669
        %v671 = vpop.f32.mrf.mxu0
        %v672 = vadd.f32 0.0, %v671
        %673 = vmatprep.mubr.f32.mxu0 0.0
        %674 = vmatmul.mubr.f32.gmra.mxu0 %v591
        %v675 = vpop.f32.mrf.mxu0
        %v676 = vadd.f32 0.0, %v675
        %v677 = vpop.f32.mrf.mxu0
        %v678 = vadd.f32 0.0, %v677
        %679 = vdwg.mxu0
        %680 = vmatprep.subr.mxu0 0.0
        %681 = vmatpush1.msra.mxu0 0.0
        %682 = vmatprep.subr.mxu0 0.0
        %683 = vmatpush1.msra.mxu0 0.0
        %684 = vmatprep.subr.mxu0 0.0
        %685 = vmatpush1.msra.mxu0 0.0
        %686 = vmatprep.subr.mxu0 0.0
        %687 = vmatpush1.msra.mxu0 0.0
        %688 = vmatprep.subr.mxu0 0.0
        %689 = vmatpush1.msra.mxu0 0.0
        %690 = vmatprep.subr.mxu0 0.0
        %691 = vmatpush1.msra.mxu0 0.0
        %692 = vmatprep.subr.mxu0 0.0
        %693 = vmatpush1.msra.mxu0 0.0
        %694 = vmatprep.subr.mxu0 0.0
        %695 = vmatpush1.msra.mxu0 0.0
        %696 = vmatprep.subr.mxu0 0.0
        %697 = vmatpush1.msra.mxu0 0.0
        %698 = vmatprep.subr.mxu0 0.0
        %699 = vmatpush1.msra.mxu0 0.0
        %700 = vmatprep.subr.mxu0 0.0
        %701 = vmatpush1.msra.mxu0 0.0
        %702 = vmatprep.subr.mxu0 0.0
        %703 = vmatpush1.msra.mxu0 0.0
        %704 = vmatprep.subr.mxu0 0.0
        %705 = vmatpush1.msra.mxu0 0.0
        %706 = vmatprep.subr.mxu0 0.0
        %707 = vmatpush1.msra.mxu0 0.0
        %708 = vmatprep.subr.mxu0 0.0
        %709 = vmatpush1.msra.mxu0 %v601
        %710 = vmatprep.subr.mxu0 0.0
        %711 = vmatpush1.msra.mxu0 %v582
        %712 = vmatprep.subr.mxu0 0.0
        %713 = vmatpush2.msra.mxu0 0.0
        %714 = vmatprep.subr.mxu0 0.0
        %715 = vmatpush2.msra.mxu0 0.0
        %716 = vmatprep.subr.mxu0 0.0
        %717 = vmatpush2.msra.mxu0 0.0
        %718 = vmatprep.subr.mxu0 0.0
        %719 = vmatpush2.msra.mxu0 0.0
        %720 = vmatprep.subr.mxu0 0.0
        %721 = vmatpush2.msra.mxu0 0.0
        %722 = vmatprep.subr.mxu0 0.0
        %723 = vmatpush2.msra.mxu0 0.0
        %724 = vmatprep.subr.mxu0 0.0
        %725 = vmatpush2.msra.mxu0 0.0
        %726 = vmatprep.subr.mxu0 0.0
        %727 = vmatpush2.msra.mxu0 0.0
        %728 = vmatprep.subr.mxu0 0.0
        %729 = vmatpush2.msra.mxu0 0.0
        %730 = vmatprep.subr.mxu0 0.0
        %731 = vmatpush2.msra.mxu0 0.0
        %732 = vmatprep.subr.mxu0 0.0
        %733 = vmatpush2.msra.mxu0 0.0
        %734 = vmatprep.subr.mxu0 0.0
        %735 = vmatpush2.msra.mxu0 0.0
        %736 = vmatprep.subr.mxu0 0.0
        %737 = vmatpush2.msra.mxu0 0.0
        %738 = vmatprep.subr.mxu0 0.0
        %739 = vmatpush2.msra.mxu0 0.0
        %740 = vmatprep.subr.mxu0 0.0
        %741 = vmatpush2.msra.mxu0 0.0
        %742 = vmatprep.subr.mxu0 0.0
        %743 = vmatpush2.msra.mxu0 0.0
        %744 = vmatprep.mubr.f32.mxu0 0.0
        %745 = vmatmul.mubr.f32.gmra.mxu0 %v588
        %v746 = vpop.f32.mrf.mxu0
        %v747 = vadd.f32 0.0, %v746
        %v748 = vpop.f32.mrf.mxu0
        %749 = vmatprep.mubr.f32.mxu0 0.0
        %750 = vmatmul.mubr.f32.gmra.mxu0 %v591
        %v751 = vpop.f32.mrf.mxu0
        %v752 = vadd.f32 0.0, %v751
        %v753 = vpop.f32.mrf.mxu0
        %754 = vdwg.mxu0
        %v755 = vadd.f32 %v412, %v670
        %v756 = vadd.f32 %v414, %v672
        %v757 = vadd.f32 %v489, %v747
        %v758 = vadd.f32 %v418, %v676
        %v759 = vadd.f32 %v420, %v678
        %v760 = vadd.f32 %v494, %v752
        %761 = vst [vmem:[%s279] sm:$0xff] %v755
        %762 = vst [vmem:[%s279 + $0x8] sm:$0xff] %v756
        %763 = vst [vmem:[%s279 + $0x10] sm:$0xff] %v757
        %764 = vst [vmem:[%s279 + $0x18] sm:$0xff] %v758
        %765 = vst [vmem:[%s279 + $0x20] sm:$0xff] %v759
        %766 = vst [vmem:[%s279 + $0x28] sm:$0xff] %v760
        %s767 = scalar_lea.vmem [#allocation5], 48
        %v768 = vld [vmem:[%s767] sm:$0xff]
        %v769 = vld [vmem:[%s767 + $0x8] sm:$0xff]
        %v770 = vld [vmem:[%s767 + $0x10] sm:$0xff]
        %v771 = vld [vmem:[%s767 + $0x18] sm:$0xf]
        %v772 = vld [vmem:[%s767 + $0x20] sm:$0xf]
        %v773 = vld [vmem:[%s767 + $0x28] sm:$0xf]
        %774 = vrot.lane.b32.xlu0 %v572, 116
        %v775 = vpop.permute.xlu0 %774
        %776 = vrot.lane.b32.xlu0 %v577, 116
        %v777 = vpop.permute.xlu0 %776
        %v778 = vsel %vm586, %v775, 0
        %v780 = vsel %vm586, %v777, 0
        %v783 = vsel %vm593, %v771, 0
        %v786 = vsel %vm593, %v772, 0
        %v789 = vsel %vm593, %v773, 0
        %791 = vmatprep.subr.mxu0 0.0
        %792 = vmatpush1.msra.mxu0 0.0
        %793 = vmatprep.subr.mxu0 0.0
        %794 = vmatpush1.msra.mxu0 0.0
        %795 = vmatprep.subr.mxu0 0.0
        %796 = vmatpush1.msra.mxu0 0.0
        %797 = vmatprep.subr.mxu0 0.0
        %798 = vmatpush1.msra.mxu0 0.0
        %799 = vmatprep.subr.mxu0 0.0
        %800 = vmatpush1.msra.mxu0 0.0
        %801 = vmatprep.subr.mxu0 0.0
        %802 = vmatpush1.msra.mxu0 0.0
        %803 = vmatprep.subr.mxu0 0.0
        %804 = vmatpush1.msra.mxu0 0.0
        %805 = vmatprep.subr.mxu0 0.0
        %806 = vmatpush1.msra.mxu0 0.0
        %807 = vmatprep.subr.mxu0 0.0
        %808 = vmatpush1.msra.mxu0 0.0
        %809 = vmatprep.subr.mxu0 0.0
        %810 = vmatpush1.msra.mxu0 0.0
        %811 = vmatprep.subr.mxu0 0.0
        %812 = vmatpush1.msra.mxu0 0.0
        %813 = vmatprep.subr.mxu0 0.0
        %814 = vmatpush1.msra.mxu0 0.0
        %815 = vmatprep.subr.mxu0 0.0
        %816 = vmatpush1.msra.mxu0 0.0
        %817 = vmatprep.subr.mxu0 0.0
        %818 = vmatpush1.msra.mxu0 0.0
        %819 = vmatprep.subr.mxu0 %v786
        %820 = vmatpush1.msra.mxu0 %v783
        %821 = vmatprep.subr.mxu0 %v769
        %822 = vmatpush1.msra.mxu0 %v768
        %823 = vmatprep.subr.mxu0 0.0
        %824 = vmatpush2.msra.mxu0 0.0
        %825 = vmatprep.subr.mxu0 0.0
        %826 = vmatpush2.msra.mxu0 0.0
        %827 = vmatprep.subr.mxu0 0.0
        %828 = vmatpush2.msra.mxu0 0.0
        %829 = vmatprep.subr.mxu0 0.0
        %830 = vmatpush2.msra.mxu0 0.0
        %831 = vmatprep.subr.mxu0 0.0
        %832 = vmatpush2.msra.mxu0 0.0
        %833 = vmatprep.subr.mxu0 0.0
        %834 = vmatpush2.msra.mxu0 0.0
        %835 = vmatprep.subr.mxu0 0.0
        %836 = vmatpush2.msra.mxu0 0.0
        %837 = vmatprep.subr.mxu0 0.0
        %838 = vmatpush2.msra.mxu0 0.0
        %839 = vmatprep.subr.mxu0 0.0
        %840 = vmatpush2.msra.mxu0 0.0
        %841 = vmatprep.subr.mxu0 0.0
        %842 = vmatpush2.msra.mxu0 0.0
        %843 = vmatprep.subr.mxu0 0.0
        %844 = vmatpush2.msra.mxu0 0.0
        %845 = vmatprep.subr.mxu0 0.0
        %846 = vmatpush2.msra.mxu0 0.0
        %847 = vmatprep.subr.mxu0 0.0
        %848 = vmatpush2.msra.mxu0 0.0
        %849 = vmatprep.subr.mxu0 0.0
        %850 = vmatpush2.msra.mxu0 0.0
        %851 = vmatprep.subr.mxu0 0.0
        %852 = vmatpush2.msra.mxu0 0.0
        %853 = vmatprep.subr.mxu0 0.0
        %854 = vmatpush2.msra.mxu0 0.0
        %855 = vmatprep.mubr.f32.mxu0 0.0
        %856 = vmatmul.mubr.f32.gmra.mxu0 %v778
        %v857 = vpop.f32.mrf.mxu0
        %v858 = vadd.f32 0.0, %v857
        %v859 = vpop.f32.mrf.mxu0
        %v860 = vadd.f32 0.0, %v859
        %861 = vmatprep.mubr.f32.mxu0 0.0
        %862 = vmatmul.mubr.f32.gmra.mxu0 %v780
        %v863 = vpop.f32.mrf.mxu0
        %v864 = vadd.f32 0.0, %v863
        %v865 = vpop.f32.mrf.mxu0
        %v866 = vadd.f32 0.0, %v865
        %867 = vdwg.mxu0
        %868 = vmatprep.subr.mxu0 0.0
        %869 = vmatpush1.msra.mxu0 0.0
        %870 = vmatprep.subr.mxu0 0.0
        %871 = vmatpush1.msra.mxu0 0.0
        %872 = vmatprep.subr.mxu0 0.0
        %873 = vmatpush1.msra.mxu0 0.0
        %874 = vmatprep.subr.mxu0 0.0
        %875 = vmatpush1.msra.mxu0 0.0
        %876 = vmatprep.subr.mxu0 0.0
        %877 = vmatpush1.msra.mxu0 0.0
        %878 = vmatprep.subr.mxu0 0.0
        %879 = vmatpush1.msra.mxu0 0.0
        %880 = vmatprep.subr.mxu0 0.0
        %881 = vmatpush1.msra.mxu0 0.0
        %882 = vmatprep.subr.mxu0 0.0
        %883 = vmatpush1.msra.mxu0 0.0
        %884 = vmatprep.subr.mxu0 0.0
        %885 = vmatpush1.msra.mxu0 0.0
        %886 = vmatprep.subr.mxu0 0.0
        %887 = vmatpush1.msra.mxu0 0.0
        %888 = vmatprep.subr.mxu0 0.0
        %889 = vmatpush1.msra.mxu0 0.0
        %890 = vmatprep.subr.mxu0 0.0
        %891 = vmatpush1.msra.mxu0 0.0
        %892 = vmatprep.subr.mxu0 0.0
        %893 = vmatpush1.msra.mxu0 0.0
        %894 = vmatprep.subr.mxu0 0.0
        %895 = vmatpush1.msra.mxu0 0.0
        %896 = vmatprep.subr.mxu0 0.0
        %897 = vmatpush1.msra.mxu0 %v789
        %898 = vmatprep.subr.mxu0 0.0
        %899 = vmatpush1.msra.mxu0 %v770
        %900 = vmatprep.subr.mxu0 0.0
        %901 = vmatpush2.msra.mxu0 0.0
        %902 = vmatprep.subr.mxu0 0.0
        %903 = vmatpush2.msra.mxu0 0.0
        %904 = vmatprep.subr.mxu0 0.0
        %905 = vmatpush2.msra.mxu0 0.0
        %906 = vmatprep.subr.mxu0 0.0
        %907 = vmatpush2.msra.mxu0 0.0
        %908 = vmatprep.subr.mxu0 0.0
        %909 = vmatpush2.msra.mxu0 0.0
        %910 = vmatprep.subr.mxu0 0.0
        %911 = vmatpush2.msra.mxu0 0.0
        %912 = vmatprep.subr.mxu0 0.0
        %913 = vmatpush2.msra.mxu0 0.0
        %914 = vmatprep.subr.mxu0 0.0
        %915 = vmatpush2.msra.mxu0 0.0
        %916 = vmatprep.subr.mxu0 0.0
        %917 = vmatpush2.msra.mxu0 0.0
        %918 = vmatprep.subr.mxu0 0.0
        %919 = vmatpush2.msra.mxu0 0.0
        %920 = vmatprep.subr.mxu0 0.0
        %921 = vmatpush2.msra.mxu0 0.0
        %922 = vmatprep.subr.mxu0 0.0
        %923 = vmatpush2.msra.mxu0 0.0
        %924 = vmatprep.subr.mxu0 0.0
        %925 = vmatpush2.msra.mxu0 0.0
        %926 = vmatprep.subr.mxu0 0.0
        %927 = vmatpush2.msra.mxu0 0.0
        %928 = vmatprep.subr.mxu0 0.0
        %929 = vmatpush2.msra.mxu0 0.0
        %930 = vmatprep.subr.mxu0 0.0
        %931 = vmatpush2.msra.mxu0 0.0
        %932 = vmatprep.mubr.f32.mxu0 0.0
        %933 = vmatmul.mubr.f32.gmra.mxu0 %v778
        %v934 = vpop.f32.mrf.mxu0
        %v935 = vadd.f32 0.0, %v934
        %v936 = vpop.f32.mrf.mxu0
        %937 = vmatprep.mubr.f32.mxu0 0.0
        %938 = vmatmul.mubr.f32.gmra.mxu0 %v780
        %v939 = vpop.f32.mrf.mxu0
        %v940 = vadd.f32 0.0, %v939
        %v941 = vpop.f32.mrf.mxu0
        %942 = vdwg.mxu0
        %v943 = vadd.f32 %v412, %v858
        %v944 = vadd.f32 %v414, %v860
        %v945 = vadd.f32 %v489, %v935
        %v946 = vadd.f32 %v418, %v864
        %v947 = vadd.f32 %v420, %v866
        %v948 = vadd.f32 %v494, %v940
        %949 = vst [vmem:[%s286] sm:$0xff] %v943
        %950 = vst [vmem:[%s286 + $0x8] sm:$0xff] %v944
        %951 = vst [vmem:[%s286 + $0x10] sm:$0xff] %v945
        %952 = vst [vmem:[%s286 + $0x18] sm:$0xff] %v946
        %953 = vst [vmem:[%s286 + $0x20] sm:$0xff] %v947
        %954 = vst [vmem:[%s286 + $0x28] sm:$0xff] %v948
        %s955 = scalar_lea.vmem [#allocation5], 96
        %v956 = vld [vmem:[%s955] sm:$0xff]
        %v957 = vld [vmem:[%s955 + $0x8] sm:$0xff]
        %v958 = vld [vmem:[%s955 + $0x10] sm:$0xff]
        %v959 = vld [vmem:[%s955 + $0x18] sm:$0xf]
        %v960 = vld [vmem:[%s955 + $0x20] sm:$0xf]
        %v961 = vld [vmem:[%s955 + $0x28] sm:$0xf]
        %962 = vrot.lane.b32.xlu0 %v572, 104
        %v963 = vpop.permute.xlu0 %962
        %964 = vrot.lane.b32.xlu0 %v577, 104
        %v965 = vpop.permute.xlu0 %964
        %v966 = vsel %vm586, %v963, 0
        %v968 = vsel %vm586, %v965, 0
        %v971 = vsel %vm593, %v959, 0
        %v974 = vsel %vm593, %v960, 0
        %v977 = vsel %vm593, %v961, 0
        %979 = vmatprep.subr.mxu0 0.0
        %980 = vmatpush1.msra.mxu0 0.0
        %981 = vmatprep.subr.mxu0 0.0
        %982 = vmatpush1.msra.mxu0 0.0
        %983 = vmatprep.subr.mxu0 0.0
        %984 = vmatpush1.msra.mxu0 0.0
        %985 = vmatprep.subr.mxu0 0.0
        %986 = vmatpush1.msra.mxu0 0.0
        %987 = vmatprep.subr.mxu0 0.0
        %988 = vmatpush1.msra.mxu0 0.0
        %989 = vmatprep.subr.mxu0 0.0
        %990 = vmatpush1.msra.mxu0 0.0
        %991 = vmatprep.subr.mxu0 0.0
        %992 = vmatpush1.msra.mxu0 0.0
        %993 = vmatprep.subr.mxu0 0.0
        %994 = vmatpush1.msra.mxu0 0.0
        %995 = vmatprep.subr.mxu0 0.0
        %996 = vmatpush1.msra.mxu0 0.0
        %997 = vmatprep.subr.mxu0 0.0
        %998 = vmatpush1.msra.mxu0 0.0
        %999 = vmatprep.subr.mxu0 0.0
        %1000 = vmatpush1.msra.mxu0 0.0
        %1001 = vmatprep.subr.mxu0 0.0
        %1002 = vmatpush1.msra.mxu0 0.0
        %1003 = vmatprep.subr.mxu0 0.0
        %1004 = vmatpush1.msra.mxu0 0.0
        %1005 = vmatprep.subr.mxu0 0.0
        %1006 = vmatpush1.msra.mxu0 0.0
        %1007 = vmatprep.subr.mxu0 %v974
        %1008 = vmatpush1.msra.mxu0 %v971
        %1009 = vmatprep.subr.mxu0 %v957
        %1010 = vmatpush1.msra.mxu0 %v956
        %1011 = vmatprep.subr.mxu0 0.0
        %1012 = vmatpush2.msra.mxu0 0.0
        %1013 = vmatprep.subr.mxu0 0.0
        %1014 = vmatpush2.msra.mxu0 0.0
        %1015 = vmatprep.subr.mxu0 0.0
        %1016 = vmatpush2.msra.mxu0 0.0
        %1017 = vmatprep.subr.mxu0 0.0
        %1018 = vmatpush2.msra.mxu0 0.0
        %1019 = vmatprep.subr.mxu0 0.0
        %1020 = vmatpush2.msra.mxu0 0.0
        %1021 = vmatprep.subr.mxu0 0.0
        %1022 = vmatpush2.msra.mxu0 0.0
        %1023 = vmatprep.subr.mxu0 0.0
        %1024 = vmatpush2.msra.mxu0 0.0
        %1025 = vmatprep.subr.mxu0 0.0
        %1026 = vmatpush2.msra.mxu0 0.0
        %1027 = vmatprep.subr.mxu0 0.0
        %1028 = vmatpush2.msra.mxu0 0.0
        %1029 = vmatprep.subr.mxu0 0.0
        %1030 = vmatpush2.msra.mxu0 0.0
        %1031 = vmatprep.subr.mxu0 0.0
        %1032 = vmatpush2.msra.mxu0 0.0
        %1033 = vmatprep.subr.mxu0 0.0
        %1034 = vmatpush2.msra.mxu0 0.0
        %1035 = vmatprep.subr.mxu0 0.0
        %1036 = vmatpush2.msra.mxu0 0.0
        %1037 = vmatprep.subr.mxu0 0.0
        %1038 = vmatpush2.msra.mxu0 0.0
        %1039 = vmatprep.subr.mxu0 0.0
        %1040 = vmatpush2.msra.mxu0 0.0
        %1041 = vmatprep.subr.mxu0 0.0
        %1042 = vmatpush2.msra.mxu0 0.0
        %1043 = vmatprep.mubr.f32.mxu0 0.0
        %1044 = vmatmul.mubr.f32.gmra.mxu0 %v966
        %v1045 = vpop.f32.mrf.mxu0
        %v1046 = vadd.f32 0.0, %v1045
        %v1047 = vpop.f32.mrf.mxu0
        %v1048 = vadd.f32 0.0, %v1047
        %1049 = vmatprep.mubr.f32.mxu0 0.0
        %1050 = vmatmul.mubr.f32.gmra.mxu0 %v968
        %v1051 = vpop.f32.mrf.mxu0
        %v1052 = vadd.f32 0.0, %v1051
        %v1053 = vpop.f32.mrf.mxu0
        %v1054 = vadd.f32 0.0, %v1053
        %1055 = vdwg.mxu0
        %1056 = vmatprep.subr.mxu0 0.0
        %1057 = vmatpush1.msra.mxu0 0.0
        %1058 = vmatprep.subr.mxu0 0.0
        %1059 = vmatpush1.msra.mxu0 0.0
        %1060 = vmatprep.subr.mxu0 0.0
        %1061 = vmatpush1.msra.mxu0 0.0
        %1062 = vmatprep.subr.mxu0 0.0
        %1063 = vmatpush1.msra.mxu0 0.0
        %1064 = vmatprep.subr.mxu0 0.0
        %1065 = vmatpush1.msra.mxu0 0.0
        %1066 = vmatprep.subr.mxu0 0.0
        %1067 = vmatpush1.msra.mxu0 0.0
        %1068 = vmatprep.subr.mxu0 0.0
        %1069 = vmatpush1.msra.mxu0 0.0
        %1070 = vmatprep.subr.mxu0 0.0
        %1071 = vmatpush1.msra.mxu0 0.0
        %1072 = vmatprep.subr.mxu0 0.0
        %1073 = vmatpush1.msra.mxu0 0.0
        %1074 = vmatprep.subr.mxu0 0.0
        %1075 = vmatpush1.msra.mxu0 0.0
        %1076 = vmatprep.subr.mxu0 0.0
        %1077 = vmatpush1.msra.mxu0 0.0
        %1078 = vmatprep.subr.mxu0 0.0
        %1079 = vmatpush1.msra.mxu0 0.0
        %1080 = vmatprep.subr.mxu0 0.0
        %1081 = vmatpush1.msra.mxu0 0.0
        %1082 = vmatprep.subr.mxu0 0.0
        %1083 = vmatpush1.msra.mxu0 0.0
        %1084 = vmatprep.subr.mxu0 0.0
        %1085 = vmatpush1.msra.mxu0 %v977
        %1086 = vmatprep.subr.mxu0 0.0
        %1087 = vmatpush1.msra.mxu0 %v958
        %1088 = vmatprep.subr.mxu0 0.0
        %1089 = vmatpush2.msra.mxu0 0.0
        %1090 = vmatprep.subr.mxu0 0.0
        %1091 = vmatpush2.msra.mxu0 0.0
        %1092 = vmatprep.subr.mxu0 0.0
        %1093 = vmatpush2.msra.mxu0 0.0
        %1094 = vmatprep.subr.mxu0 0.0
        %1095 = vmatpush2.msra.mxu0 0.0
        %1096 = vmatprep.subr.mxu0 0.0
        %1097 = vmatpush2.msra.mxu0 0.0
        %1098 = vmatprep.subr.mxu0 0.0
        %1099 = vmatpush2.msra.mxu0 0.0
        %1100 = vmatprep.subr.mxu0 0.0
        %1101 = vmatpush2.msra.mxu0 0.0
        %1102 = vmatprep.subr.mxu0 0.0
        %1103 = vmatpush2.msra.mxu0 0.0
        %1104 = vmatprep.subr.mxu0 0.0
        %1105 = vmatpush2.msra.mxu0 0.0
        %1106 = vmatprep.subr.mxu0 0.0
        %1107 = vmatpush2.msra.mxu0 0.0
        %1108 = vmatprep.subr.mxu0 0.0
        %1109 = vmatpush2.msra.mxu0 0.0
        %1110 = vmatprep.subr.mxu0 0.0
        %1111 = vmatpush2.msra.mxu0 0.0
        %1112 = vmatprep.subr.mxu0 0.0
        %1113 = vmatpush2.msra.mxu0 0.0
        %1114 = vmatprep.subr.mxu0 0.0
        %1115 = vmatpush2.msra.mxu0 0.0
        %1116 = vmatprep.subr.mxu0 0.0
        %1117 = vmatpush2.msra.mxu0 0.0
        %1118 = vmatprep.subr.mxu0 0.0
        %1119 = vmatpush2.msra.mxu0 0.0
        %1120 = vmatprep.mubr.f32.mxu0 0.0
        %1121 = vmatmul.mubr.f32.gmra.mxu0 %v966
        %v1122 = vpop.f32.mrf.mxu0
        %v1123 = vadd.f32 0.0, %v1122
        %v1124 = vpop.f32.mrf.mxu0
        %1125 = vmatprep.mubr.f32.mxu0 0.0
        %1126 = vmatmul.mubr.f32.gmra.mxu0 %v968
        %v1127 = vpop.f32.mrf.mxu0
        %v1128 = vadd.f32 0.0, %v1127
        %v1129 = vpop.f32.mrf.mxu0
        %1130 = vdwg.mxu0
        %v1131 = vadd.f32 %v412, %v1046
        %v1132 = vadd.f32 %v414, %v1048
        %v1133 = vadd.f32 %v489, %v1123
        %v1134 = vadd.f32 %v418, %v1052
        %v1135 = vadd.f32 %v420, %v1054
        %v1136 = vadd.f32 %v494, %v1128
        %s1137 = scalar_lea.vmem %s286, 48 [#allocation8]
        %1138 = vst [vmem:[%s1137] sm:$0xff] %v1131
        %1139 = vst [vmem:[%s1137 + $0x8] sm:$0xff] %v1132
        %1140 = vst [vmem:[%s1137 + $0x10] sm:$0xff] %v1133
        %1141 = vst [vmem:[%s1137 + $0x18] sm:$0xff] %v1134
        %1142 = vst [vmem:[%s1137 + $0x20] sm:$0xff] %v1135
        %1143 = vst [vmem:[%s1137 + $0x28] sm:$0xff] %v1136
        %s1144 = sand.u32 %s144, 1
        %s1145 = scalar_lea.sflag [#allocation4], %s1144
        %s1146 = sand.u32 %s144, 1
        %s1147 = smul.addr %s1146, 48
        %s1148 = scalar_lea.vmem [#allocation7], %s1147
        %s1149 = sand.u32 %s170, 1
        %s1150 = scalar_lea.sflag [#allocation9], %s1149
        %s1151 = sand.u32 %s170, 1
        %s1152 = smul.addr %s1151, 96
        %s1153 = scalar_lea.vmem [#allocation8], %s1152
        // Predicated region
        $region49: #{tpu_custom_call.1} parent=39 // pred_check
          %p1154 = pneg %p154
        $region50: #{tpu_custom_call.1} parent=39 // pred_check_branch
          %1156 = sbr.rel (%p1154) target = $region52
        $region51: #{tpu_custom_call.1} parent=39 // pred_region
          %s1157 = smul.u32 2, %s26
          %s1159 = ssub.s32 768, 768
          %1160 = vsyncadd %s1145, %s1159
          %s1161 = smul.addr %s1157, 3
          %s1162 = smul.addr %s1161, 128
          %s1163 = scalar_lea.hbm %s5, %s1162
          %s1164 = sshll.u32 %s1148, 4
          %s1165 = int_to_ptr.vmem [resolvable:$true] %s1164
          %1170 = dma.vmem_to_hbm [thread:$0]  %s1165, 768, %s1163, %s1145, 384, 384, 24
        $region52: #{tpu_custom_call.1} parent=39 // pred_fallthru
          _
        // Predicated region
        $region53: #{tpu_custom_call.1} parent=39 // pred_check
          %p1171 = pneg %p180
        $region54: #{tpu_custom_call.1} parent=39 // pred_check_branch
          %1173 = sbr.rel (%p1171) target = $region56
        $region55: #{tpu_custom_call.1} parent=39 // pred_region
          #allocation11 [shape = 'u32[6]{0}', space=smem, size = 0x18, scoped, tag = 'DMA stride descriptor']
          %s1174 = smul.u32 2, %s26
          %s1176 = ssub.s32 1536, 1536
          %1177 = vsyncadd %s1150, %s1176
          %s1178 = smul.addr %s1174, 3
          %s1179 = smul.addr %s1178, 128
          %s1180 = scalar_lea.hbm %s6, %s1179
          %s1182 = sshll.u32 1, 14
          %s1183 = sxor.u32 4294967295, %s1182
          %s1186 = sshll.u32 7, 18
          %s1187 = sxor.u32 4294967295, %s1186
          %s1188 = sand.u32 0, %s1187
          %s1190 = sor.u32 %s1188, 0
          %s1191 = sshll.u32 %s1153, 4
          %s1192 = int_to_ptr.vmem [resolvable:$true] %s1191
          %1198 = sst [smem:[#allocation11]] 768
          %s1199 = scalar_lea.smem [#allocation11], 1
          %1200 = sst [smem:[%s1199]] 2304
          %s1201 = scalar_lea.smem [#allocation11], 2
          %1202 = sst [smem:[%s1201]] 2
          %s1203 = scalar_lea.smem [#allocation11], 3
          %1204 = sst [smem:[%s1203]] 384
          %s1205 = scalar_lea.smem [#allocation11], 4
          %1206 = sst [smem:[%s1205]] 384
          %s1207 = scalar_lea.smem [#allocation11], 5
          %1208 = sst [smem:[%s1207]] 24
          %1210 = dma.general %s1192, 1536, %s1180, %s1150, 131072, [#allocation11], %s1190, 0
        $region56: #{tpu_custom_call.1} parent=39 // pred_fallthru
          _
      $region40: #{tpu_custom_call.1} parent=5 // pred_fallthru
        _
      %p1211 = scmp.le.s32.totalorder 2, %s21
      // Predicated region
      $region57: #{tpu_custom_call.1} parent=5 // pred_check
        %p1212 = pneg %p1211
      $region58: #{tpu_custom_call.1} parent=5 // pred_check_branch
        %1214 = sbr.rel (%p1212) target = $region60
      $region59: #{tpu_custom_call.1} parent=5 // pred_region
        %s1215 = ssub.s32 %s21, 2
        // Predicated region
        $region61: #{tpu_custom_call.1} parent=59 // pred_check
          %p1216 = pneg %p160
        $region62: #{tpu_custom_call.1} parent=59 // pred_check_branch
          %1218 = sbr.rel (%p1216) target = $region64
        $region63: #{tpu_custom_call.1} parent=59 // pred_region
          %s1219 = sand.u32 %s145, 1
          %s1220 = scalar_lea.sflag [#allocation4], %s1219
          %s1221 = sand.u32 %s145, 1
          %s1222 = smul.addr %s1221, 48
          %s1223 = scalar_lea.vmem [#allocation7], %s1222
          %1224 = dma.done %s1220, 768
        $region64: #{tpu_custom_call.1} parent=59 // pred_fallthru
          _
        // Predicated region
        $region65: #{tpu_custom_call.1} parent=59 // pred_check
          %p1225 = pneg %p186
        $region66: #{tpu_custom_call.1} parent=59 // pred_check_branch
          %1227 = sbr.rel (%p1225) target = $region68
        $region67: #{tpu_custom_call.1} parent=59 // pred_region
          %s1228 = sand.u32 %s171, 1
          %s1229 = scalar_lea.sflag [#allocation9], %s1228
          %s1230 = sand.u32 %s171, 1
          %s1231 = smul.addr %s1230, 96
          %s1232 = scalar_lea.vmem [#allocation8], %s1231
          %1233 = dma.done %s1229, 1536
        $region68: #{tpu_custom_call.1} parent=59 // pred_fallthru
          _
      $region60: #{tpu_custom_call.1} parent=5 // pred_fallthru
        _
    $region6: #{tpu_custom_call.1} parent=1 // loop_footer
      %s25 = sadd.s32 1, %s21
    $region7: #{tpu_custom_call.1} parent=1 // loop_footer_branch
      %20 = sbr.rel target = $region3
    $region8: #{tpu_custom_call.1} parent=1 // loop_exit
      _
    %1234 = vsyncpa [#allocation3], 1
    %s1235 = scalar_lea.sflag [#allocation3], 1
    %1236 = vsyncpa %s1235, 1
    %1237 = vsyncpa [#allocation6], 1
    %1238 = vsyncpa [#allocation4], 1
    %s1239 = scalar_lea.sflag [#allocation4], 1
    %1240 = vsyncpa %s1239, 1
    %1241 = vsyncpa [#allocation9], 1
    %s1242 = scalar_lea.sflag [#allocation9], 1
    %1243 = vsyncpa %s1242, 1

</llo_original>
